<compile_context>
chip_gen: v7x
topology: tpu7x:2x2x1
jax: 0.10.0
libtpu: 0.0.40
codegen_flags: <defaults>
</compile_context>

<pallas_src>
import functools

import jax
import jax.numpy as jnp
from jax.experimental import pallas as pl
from jax.experimental.pallas import tpu as pltpu


def _round_up(n, m):
    return ((n + m - 1) // m) * m


# ----------------------------------------------------------------------------
# Pallas kernel (transposed layout: features = sublanes, target rows = lanes)
#   h1^T = relu(W1x^T @ x^T + h_r)        h_r = (R @ W1r + b1)^T, precomputed
#   h2^T = relu(W2^T @ h1^T + b2^T)
#   out  = W3^T @ h2^T + b3^T             rows [0,y_dim) = mu,
#                                         rows [y_dim,2*y_dim) = logsigma
# ----------------------------------------------------------------------------
def _decoder_mlp_kernel(x_ref, hr_ref, w1xt_ref, w2t_ref, b2_ref, w3t_ref,
                        b3_ref, out_ref, *, x_dim, y_dim):
    x = x_ref[...]                                    # (x_dim, tm)  f32
    w1xt = w1xt_ref[...]                              # (r_dim, x_dim) f32

    # ---- layer 1: tiny-K contraction on the VPU (MXU pass would be padding) --
    if x_dim <= 8:
        h = w1xt[:, 0:1] * x[0:1, :]                  # (r_dim, tm)
        for d in range(1, x_dim):
            h = h + w1xt[:, d:d + 1] * x[d:d + 1, :]
    else:
        h = jnp.dot(w1xt.astype(jnp.bfloat16), x.astype(jnp.bfloat16),
                    preferred_element_type=jnp.float32)
    # + folded (R @ W1r + b1); hr is (r_dim, 1) (global rep) or (r_dim, tm)
    h = jnp.maximum(h + hr_ref[...], 0.0)

    # ---- layer 2 (MXU, bf16 operands, f32 accumulation) ----------------------
    h = jnp.dot(w2t_ref[...], h.astype(w2t_ref.dtype),
                preferred_element_type=jnp.float32)
    h = jnp.maximum(h + b2_ref[...], 0.0)

    # ---- output head: (2*y_dim, tm), lane-dense store ------------------------
    out = jnp.dot(w3t_ref[...], h.astype(w3t_ref.dtype),
                  preferred_element_type=jnp.float32) + b3_ref[...]
    row = jax.lax.broadcasted_iota(jnp.int32, out.shape, 0)
    # numerically stable softplus: max(x,0) + log1p(exp(-|x|))  (EUP-friendly)
    softplus = jnp.maximum(out, 0.0) + jnp.log1p(jnp.exp(-jnp.abs(out)))
    out_ref[...] = jnp.where(row < y_dim, out, 0.01 + 0.99 * softplus
                             ).astype(out_ref.dtype)


def decoder_mlp_pallas(x_t, h_r_t, params, y_dim, *, tm_max=1024):
    """x_t: (B, x_dim, n_target) f32 (x transposed, shared across n_z)
    h_r_t: (n_z, B, r_dim, n_reps) f32 pre-activation (R @ W1r + b1)^T,
           n_reps in {1, n_target}
    returns (mu, sigma), each (n_z, B, n_target, y_dim) f32."""
    w1xt, w2t, b2t, w3t, b3t = params
    n_z, B, r_dim, n_reps = h_r_t.shape
    _, x_dim, n_target = x_t.shape
    d_out = w3t.shape[0]                              # = 2*y_dim

    # target-row tile (lane axis): multiple of 128 or the full dim when small;
    # no wrapper-side padding — cdiv grid + Pallas edge-block masking instead
    if n_target <= 128:
        tm = n_target
    else:
        tm = min(tm_max, (n_target // 128) * 128)
        if n_z * B * pl.cdiv(n_target, tm) < 2:       # keep both v7x TCs busy
            tm = max(128, _round_up(pl.cdiv(n_target, 2), 128))
    n_tiles = pl.cdiv(n_target, tm)

    if n_reps == 1:                                   # global (CNP-style) rep
        hr_cols = 1
        hr_map = lambda z, b, t: (z, b, 0, 0)
    else:                                             # target-dependent rep
        hr_cols = tm
        hr_map = lambda z, b, t: (z, b, 0, t)

    full2 = lambda z, b, t: (0, 0)
    kernel = functools.partial(_decoder_mlp_kernel, x_dim=x_dim, y_dim=y_dim)

    out = pl.pallas_call(
        kernel,
        out_shape=jax.ShapeDtypeStruct((n_z, B, d_out, n_target), jnp.float32),
        grid_spec=pltpu.PrefetchScalarGridSpec(
            num_scalar_prefetch=0,
            grid=(n_z, B, n_tiles),
            in_specs=[
                pl.BlockSpec((None, x_dim, tm),
                             lambda z, b, t: (b, 0, t)),           # x^T   (f32)
                pl.BlockSpec((None, None, r_dim, hr_cols), hr_map),  # h_r^T (f32)
                pl.BlockSpec((r_dim, x_dim), full2),                 # W1x^T (f32)
                pl.BlockSpec((r_dim, r_dim), full2),                 # W2^T  (bf16)
                pl.BlockSpec((r_dim, 1), full2),                     # b2^T  (f32)
                pl.BlockSpec((d_out, r_dim), full2),                 # W3^T  (bf16)
                pl.BlockSpec((d_out, 1), full2),                     # b3^T  (f32)
            ],
            out_specs=pl.BlockSpec((None, None, d_out, tm),
                                   lambda z, b, t: (z, b, 0, t)),
        ),
        compiler_params=pltpu.CompilerParams(
            dimension_semantics=("parallel", "parallel", "parallel")),
    )(x_t, h_r_t, w1xt, w2t, b2t, w3t, b3t)

    mu = jnp.swapaxes(out[:, :, :y_dim, :], -1, -2)          # (n_z,B,n_t,y_dim)
    sigma = jnp.swapaxes(out[:, :, y_dim:, :], -1, -2)
    return mu, sigma


# ----------------------------------------------------------------------------
# NeuralProcessFamily (JAX / Pallas version)
# ----------------------------------------------------------------------------
class NeuralProcessFamilyPallas:
    """Mirrors NeuralProcessFamily.forward; the decoder MLP runs in one Pallas kernel."""

    def __init__(self, x_dim, y_dim, r_dim=128, key=None,
                 compute_dtype=jnp.bfloat16):
        self.x_dim = x_dim
        self.y_dim = y_dim
        self.r_dim = r_dim
        self.compute_dtype = compute_dtype

        if key is None:
            key = jax.random.PRNGKey(0)
        keys = jax.random.split(key, 4)

        d_in = x_dim + r_dim
        d_out = 2 * y_dim

        def init_linear(k, fan_in, fan_out):
            kw, kb = jax.random.split(k)
            bound = 1.0 / jnp.sqrt(fan_in)
            w = jax.random.uniform(kw, (fan_in, fan_out), jnp.float32, -bound, bound)
            b = jax.random.uniform(kb, (1, fan_out), jnp.float32, -bound, bound)
            return w, b

        # decoder = MLP(x_dim + r_dim, 2*y_dim, n_hidden_layers=2, hidden_size=r_dim)
        w1, b1 = init_linear(keys[0], d_in, r_dim)
        w2, b2 = init_linear(keys[1], r_dim, r_dim)
        w3, b3 = init_linear(keys[2], r_dim, d_out)
        self.decoder_params_f32 = (w1, b1, w2, b2, w3, b3)    # for reference check

        # wrapper-side fold of the R-contraction (h_r = R @ W1r + b1)
        self.w1r = w1[x_dim:]                                 # (r_dim, r_dim) f32
        self.b1 = b1                                          # (1, r_dim)    f32

        # kernel-side transposed parameters
        cd = compute_dtype
        self.kernel_params = (
            w1[:x_dim].T,                                     # W1x^T (r_dim,x_dim) f32
            w2.T.astype(cd),                                  # W2^T  (r_dim,r_dim) bf16
            b2.T,                                             # b2^T  (r_dim,1)     f32
            w3.T.astype(cd),                                  # W3^T  (d_out,r_dim) bf16
            b3.T,                                             # b3^T  (d_out,1)     f32
        )

        # simple deterministic context-encoder weights (stand-in for abstract encoder)
        self.enc_w, self.enc_b = init_linear(keys[3], x_dim + y_dim, r_dim)

    # -- abstract in the reference module; deterministic CNP-style stand-ins --
    # TODO(synk): encode_* are abstract in NeuralProcessFamily; concrete
    # deterministic (CNP-style mean-pool, n_z=1) implementations used here.
    def encode_context_representation(self, x_context, y_context):
        xy = jnp.concatenate([x_context, y_context], axis=-1)    # [B, Nc, x+y]
        h = jnp.maximum(xy @ self.enc_w + self.enc_b, 0.0)       # [B, Nc, r]
        R = jnp.mean(h, axis=1, keepdims=True)                   # [B, 1, r]
        return R

    def encode_latent(self, x_context, R, x_target, y_target):
        z = R[:, 0, :][None]                                     # [n_z=1, B, r]
        q_zc = (R[:, 0, :], jnp.ones_like(R[:, 0, :]))
        q_zct = q_zc
        return z, q_zc, q_zct

    def encode_target_representation(self, x_context, z, R, x_target):
        # Global (target-independent) representation: one rep per (z, b) group.
        # The broadcast to n_target is deferred to decode(), which folds
        # R @ W1r into a per-group bias instead of streaming n_target copies.
        n_z = z.shape[0]
        R_target = jnp.broadcast_to(R[None], (n_z,) + R.shape)   # [n_z, B, 1, r]
        return R_target

    # -- concrete decode(), hot path in Pallas --
    def decode(self, x_target, R_target):
        B, n_target, x_dim = x_target.shape
        n_z, _, n_reps, r_dim = R_target.shape
        if n_reps not in (1, n_target):
            raise ValueError("R_target must have 1 or n_target representations")

        # Fold the R @ W1r contraction (+ b1) into a layer-1 pre-activation.
        # For a global representation (n_reps == 1) this is a tiny
        # (n_z*B, r_dim) x (r_dim, r_dim) matmul and the n_target-wide broadcast
        # of R is never materialized or streamed through HBM.
        h_r = jnp.einsum('zbtr,rh->zbth', R_target.astype(jnp.float32),
                         self.w1r,
                         precision=jax.lax.Precision.HIGHEST) + self.b1
        h_r_t = jnp.swapaxes(h_r, -1, -2)                        # (n_z,B,r,n_reps)

        # x transposed once (lane-dense kernel input); shared across all n_z
        x_t = jnp.swapaxes(x_target, 1, 2).astype(jnp.float32)   # (B, x_dim, n_t)

        mu, sigma = decoder_mlp_pallas(x_t, h_r_t, self.kernel_params, self.y_dim)
        # TODO(synk): torch.distributions.Normal(mu, sigma) returned as a (mu, sigma) tuple.
        return (mu, sigma)

    def forward(self, x_context, y_context, x_target, y_target=None):
        R = self.encode_context_representation(x_context, y_context)
        z, q_zc, q_zct = self.encode_latent(x_context, R, x_target, y_target)
        R_target = self.encode_target_representation(x_context, z, R, x_target)
        p_y_target = self.decode(x_target, R_target)
        return (p_y_target, z, q_zc, q_zct)


# ----------------------------------------------------------------------------
# plain-JAX references for verification
# ----------------------------------------------------------------------------
def _decoder_ref_matched(x_target, R_target, model):
    """Mirrors the kernel's dtype handling (exact f32 layer 1, bf16 MXU operands)."""
    w1, b1, w2, b2, w3, b3 = model.decoder_params_f32
    x_dim, y_dim, cd = model.x_dim, model.y_dim, model.compute_dtype
    n_z, B, n_reps, r_dim = R_target.shape
    n_target = x_target.shape[1]
    w1x, w1r = w1[:x_dim], w1[x_dim:]

    h_r = jnp.einsum('zbtr,rh->zbth', R_target, w1r,
                     precision=jax.lax.Precision.HIGHEST) + b1
    if n_reps == 1:
        h_r = jnp.broadcast_to(h_r, (n_z, B, n_target, r_dim))
    xw = jnp.einsum('btd,dh->bth', x_target, w1x,
                    precision=jax.lax.Precision.HIGHEST)[None]
    h1 = jnp.maximum(xw + h_r, 0.0)
    h2 = jnp.maximum(jnp.dot(h1.astype(cd), w2.astype(cd),
                             preferred_element_type=jnp.float32) + b2, 0.0)
    out = jnp.dot(h2.astype(cd), w3.astype(cd),
                  preferred_element_type=jnp.float32) + b3
    mu = out[..., :y_dim]
    sigma = 0.01 + 0.99 * jax.nn.softplus(out[..., y_dim:])
    return mu, sigma


def _decoder_ref_f32(x_target, R_target, params_f32, y_dim):
    """Pure-f32 reference following the original module's concat decode."""
    w1, b1, w2, b2, w3, b3 = params_f32
    n_z, B, n_reps, r_dim = R_target.shape
    n_target, x_dim = x_target.shape[1], x_target.shape[2]
    R_full = jnp.broadcast_to(R_target, (n_z, B, n_target, r_dim))
    x_full = jnp.broadcast_to(x_target[None], (n_z, B, n_target, x_dim))
    x = jnp.concatenate([x_full, R_full], axis=-1).reshape(n_z * B * n_target, -1)
    h = jnp.maximum(x @ w1 + b1, 0.0)
    h = jnp.maximum(h @ w2 + b2, 0.0)
    out = h @ w3 + b3
    mu = out[:, :y_dim].reshape(n_z, B, n_target, y_dim)
    logsigma = out[:, y_dim:].reshape(n_z, B, n_target, y_dim)
    sigma = 0.01 + 0.99 * jax.nn.softplus(logsigma)
    return mu, sigma


if __name__ == "__main__":
    key = jax.random.PRNGKey(0)
    k1, k2, k3, kp = jax.random.split(key, 4)

    batch = 2
    n_context = 8
    n_target = 16
    x_dim = 2
    y_dim = 1
    r_dim = 128            # module default; keeps the hidden contraction 128-aligned

    x_context = jax.random.normal(k1, (batch, n_context, x_dim), jnp.float32)
    y_context = jax.random.normal(k2, (batch, n_context, y_dim), jnp.float32)
    x_target = jax.random.normal(k3, (batch, n_target, x_dim), jnp.float32)

    model = NeuralProcessFamilyPallas(x_dim, y_dim, r_dim=r_dim, key=kp)

    (mu, sigma), z, q_zc, q_zct = model.forward(x_context, y_context, x_target)
    jax.block_until_ready((mu, sigma, z))

    # rebuild the decoder inputs exactly as forward() does
    R = model.encode_context_representation(x_context, y_context)
    z_, _, _ = model.encode_latent(x_context, R, x_target, None)
    R_t = model.encode_target_representation(x_context, z_, R, x_target)   # (1,B,1,r)

    # 1) exact-path check: same dtype handling as the kernel
    mu_m, sigma_m = _decoder_ref_matched(x_target, R_t, model)
    # 2) semantic check vs. the original f32 decoder (looser: bf16 matmul operands)
    mu_f, sigma_f = _decoder_ref_f32(x_target, R_t, model.decoder_params_f32, y_dim)
    # 3) general (per-target-row representation) path through the same kernel
    R_t_full = jnp.broadcast_to(R_t, (1, batch, n_target, r_dim))
    mu_g, sigma_g = model.decode(x_target, R_t_full)
    jax.block_until_ready((mu_m, mu_f, mu_g))

    assert mu.shape == (1, batch, n_target, y_dim)
    assert sigma.shape == (1, batch, n_target, y_dim)
    assert jnp.allclose(mu, mu_m, atol=1e-3, rtol=1e-3)
    assert jnp.allclose(sigma, sigma_m, atol=1e-3, rtol=1e-3)
    assert jnp.allclose(mu, mu_f, atol=5e-2, rtol=5e-2)
    assert jnp.allclose(sigma, sigma_f, atol=5e-2, rtol=5e-2)
    assert jnp.allclose(mu, mu_g, atol=1e-3, rtol=1e-3)
    assert jnp.allclose(sigma, sigma_g, atol=1e-3, rtol=1e-3)
    assert bool(jnp.all(sigma > 0.0))

    print("KERNEL_OK")
</pallas_src>

<mosaic_0001>
module attributes {stable_mosaic.version = 11 : i64} {
  func.func @_decoder_mlp_kernel(%arg0: i32, %arg1: i32, %arg2: i32, %arg3: memref<1x2x16xf32, #tpu.memory_space<vmem>>, %arg4: memref<1x1x128x1xf32, #tpu.memory_space<vmem>>, %arg5: memref<128x2xf32, #tpu.memory_space<vmem>>, %arg6: memref<128x128xbf16, #tpu.memory_space<vmem>>, %arg7: memref<128x1xf32, #tpu.memory_space<vmem>>, %arg8: memref<2x128xbf16, #tpu.memory_space<vmem>>, %arg9: memref<2x1xf32, #tpu.memory_space<vmem>>, %arg10: memref<1x1x2x16xf32, #tpu.memory_space<vmem>>) attributes {dimension_semantics = [#tpu.dimension_semantics<parallel>, #tpu.dimension_semantics<parallel>, #tpu.dimension_semantics<parallel>], iteration_bounds = array<i64: 1, 2, 1>, scalar_prefetch = 0 : i64, scratch_operands = 0 : i64, tpu.core_type = #tpu.core_type<tc>, window_params = [{transform_indices = @transform_0, window_bounds = array<i64: 1, 2, 16>}, {transform_indices = @transform_1, window_bounds = array<i64: 1, 1, 128, 1>}, {pipeline_mode = #tpu.pipeline_mode<synchronous>, transform_indices = @transform_2, window_bounds = array<i64: 128, 2>}, {pipeline_mode = #tpu.pipeline_mode<synchronous>, transform_indices = @transform_3, window_bounds = array<i64: 128, 128>}, {pipeline_mode = #tpu.pipeline_mode<synchronous>, transform_indices = @transform_4, window_bounds = array<i64: 128, 1>}, {pipeline_mode = #tpu.pipeline_mode<synchronous>, transform_indices = @transform_5, window_bounds = array<i64: 2, 128>}, {pipeline_mode = #tpu.pipeline_mode<synchronous>, transform_indices = @transform_6, window_bounds = array<i64: 2, 1>}, {transform_indices = @transform_7, window_bounds = array<i64: 1, 1, 2, 16>}]} {
    %c0 = arith.constant 0 : index
    %c0_0 = arith.constant 0 : index
    %c0_1 = arith.constant 0 : index
    %0 = vector.load %arg3[%c0, %c0_0, %c0_1] : memref<1x2x16xf32, #tpu.memory_space<vmem>>, vector<1x2x16xf32>
    %1 = vector.shape_cast %0 : vector<1x2x16xf32> to vector<2x16xf32>
    %c0_2 = arith.constant 0 : index
    %c0_3 = arith.constant 0 : index
    %2 = vector.load %arg5[%c0_2, %c0_3] : memref<128x2xf32, #tpu.memory_space<vmem>>, vector<128x2xf32>
    %3 = vector.extract_strided_slice %2 {offsets = [0, 0], sizes = [128, 1], strides = [1, 1]} : vector<128x2xf32> to vector<128x1xf32>
    %4 = vector.extract_strided_slice %1 {offsets = [0, 0], sizes = [1, 16], strides = [1, 1]} : vector<2x16xf32> to vector<1x16xf32>
    %5 = vector.broadcast %3 : vector<128x1xf32> to vector<128x16xf32>
    %6 = vector.broadcast %4 : vector<1x16xf32> to vector<128x16xf32>
    %7 = arith.mulf %5, %6 : vector<128x16xf32>
    %8 = vector.extract_strided_slice %2 {offsets = [0, 1], sizes = [128, 1], strides = [1, 1]} : vector<128x2xf32> to vector<128x1xf32>
    %9 = vector.extract_strided_slice %1 {offsets = [1, 0], sizes = [1, 16], strides = [1, 1]} : vector<2x16xf32> to vector<1x16xf32>
    %10 = vector.broadcast %8 : vector<128x1xf32> to vector<128x16xf32>
    %11 = vector.broadcast %9 : vector<1x16xf32> to vector<128x16xf32>
    %12 = arith.mulf %10, %11 : vector<128x16xf32>
    %13 = arith.addf %7, %12 : vector<128x16xf32>
    %c0_4 = arith.constant 0 : index
    %c0_5 = arith.constant 0 : index
    %c0_6 = arith.constant 0 : index
    %c0_7 = arith.constant 0 : index
    %14 = vector.load %arg4[%c0_4, %c0_5, %c0_6, %c0_7] : memref<1x1x128x1xf32, #tpu.memory_space<vmem>>, vector<1x1x128x1xf32>
    %15 = vector.shape_cast %14 : vector<1x1x128x1xf32> to vector<128x1xf32>
    %16 = vector.broadcast %15 : vector<128x1xf32> to vector<128x16xf32>
    %17 = arith.addf %13, %16 : vector<128x16xf32>
    %cst = arith.constant 0.000000e+00 : f32
    %18 = vector.broadcast %cst : f32 to vector<128x16xf32>
    %19 = arith.maximumf %17, %18 : vector<128x16xf32>
    %c0_8 = arith.constant 0 : index
    %c0_9 = arith.constant 0 : index
    %20 = vector.load %arg6[%c0_8, %c0_9] : memref<128x128xbf16, #tpu.memory_space<vmem>>, vector<128x128xbf16>
    %21 = arith.truncf %19 : vector<128x16xf32> to vector<128x16xbf16>
    %cst_10 = arith.constant dense<0.000000e+00> : vector<128x16xf32>
    %22 = tpu.matmul %20, %21, %cst_10 {dimension_numbers = #tpu.dot_dimension_numbers<[1], [0], [0], [1], [0, 0, 1, 1], [], []>} : vector<128x128xbf16>, vector<128x16xbf16>, vector<128x16xf32> -> vector<128x16xf32>
    %c0_11 = arith.constant 0 : index
    %c0_12 = arith.constant 0 : index
    %23 = vector.load %arg7[%c0_11, %c0_12] : memref<128x1xf32, #tpu.memory_space<vmem>>, vector<128x1xf32>
    %24 = vector.broadcast %23 : vector<128x1xf32> to vector<128x16xf32>
    %25 = arith.addf %22, %24 : vector<128x16xf32>
    %cst_13 = arith.constant 0.000000e+00 : f32
    %26 = vector.broadcast %cst_13 : f32 to vector<128x16xf32>
    %27 = arith.maximumf %25, %26 : vector<128x16xf32>
    %c0_14 = arith.constant 0 : index
    %c0_15 = arith.constant 0 : index
    %28 = vector.load %arg8[%c0_14, %c0_15] : memref<2x128xbf16, #tpu.memory_space<vmem>>, vector<2x128xbf16>
    %29 = arith.truncf %27 : vector<128x16xf32> to vector<128x16xbf16>
    %cst_16 = arith.constant dense<0.000000e+00> : vector<2x16xf32>
    %30 = tpu.matmul %28, %29, %cst_16 {dimension_numbers = #tpu.dot_dimension_numbers<[1], [0], [0], [1], [0, 0, 1, 1], [], []>} : vector<2x128xbf16>, vector<128x16xbf16>, vector<2x16xf32> -> vector<2x16xf32>
    %c0_17 = arith.constant 0 : index
    %c0_18 = arith.constant 0 : index
    %31 = vector.load %arg9[%c0_17, %c0_18] : memref<2x1xf32, #tpu.memory_space<vmem>>, vector<2x1xf32>
    %32 = vector.broadcast %31 : vector<2x1xf32> to vector<2x16xf32>
    %33 = arith.addf %30, %32 : vector<2x16xf32>
    %34 = tpu.iota {dimensions = array<i32: 0>} : vector<2x16xi32>
    %cst_19 = arith.constant 0.000000e+00 : f32
    %35 = vector.broadcast %cst_19 : f32 to vector<2x16xf32>
    %36 = arith.maximumf %33, %35 : vector<2x16xf32>
    %37 = math.absf %33 : vector<2x16xf32>
    %cst_20 = arith.constant 0.000000e+00 : f32
    %38 = vector.broadcast %cst_20 : f32 to vector<2x16xf32>
    %39 = arith.subf %38, %37 : vector<2x16xf32>
    %40 = math.exp %39 : vector<2x16xf32>
    %41 = math.log1p %40 : vector<2x16xf32>
    %42 = arith.addf %36, %41 : vector<2x16xf32>
    %c1_i32 = arith.constant 1 : i32
    %43 = vector.broadcast %c1_i32 : i32 to vector<2x16xi32>
    %44 = arith.cmpi slt, %34, %43 : vector<2x16xi32>
    %cst_21 = arith.constant 9.900000e-01 : f32
    %45 = vector.broadcast %cst_21 : f32 to vector<2x16xf32>
    %46 = arith.mulf %45, %42 : vector<2x16xf32>
    %cst_22 = arith.constant 0.00999999977 : f32
    %47 = vector.broadcast %cst_22 : f32 to vector<2x16xf32>
    %48 = arith.addf %47, %46 : vector<2x16xf32>
    %49 = arith.select %44, %33, %48 : vector<2x16xi1>, vector<2x16xf32>
    %c0_23 = arith.constant 0 : index
    %c0_24 = arith.constant 0 : index
    %c0_25 = arith.constant 0 : index
    %c0_26 = arith.constant 0 : index
    %50 = vector.load %arg10[%c0_23, %c0_24, %c0_25, %c0_26] : memref<1x1x2x16xf32, #tpu.memory_space<vmem>>, vector<1x1x2x16xf32>
    %51 = vector.shape_cast %50 : vector<1x1x2x16xf32> to vector<2x16xf32>
    %52 = vector.shape_cast %49 : vector<2x16xf32> to vector<1x1x2x16xf32>
    tpu.vector_store %arg10[%c0_23, %c0_24, %c0_25, %c0_26], %52 {strides = array<i32>} : memref<1x1x2x16xf32, #tpu.memory_space<vmem>>, vector<1x1x2x16xf32>,
    return
  }
  func.func @transform_0(%arg0: i32, %arg1: i32, %arg2: i32) -> (i32, i32, i32) {
    %c0_i32 = arith.constant 0 : i32
    %c0_i32_0 = arith.constant 0 : i32
    return %arg1, %c0_i32, %arg2 : i32, i32, i32
  }
  func.func @transform_1(%arg0: i32, %arg1: i32, %arg2: i32) -> (i32, i32, i32, i32) {
    %c0_i32 = arith.constant 0 : i32
    %c0_i32_0 = arith.constant 0 : i32
    %c0_i32_1 = arith.constant 0 : i32
    return %arg0, %arg1, %c0_i32, %c0_i32_0 : i32, i32, i32, i32
  }
  func.func @transform_2(%arg0: i32, %arg1: i32, %arg2: i32) -> (i32, i32) {
    %c0_i32 = arith.constant 0 : i32
    %c0_i32_0 = arith.constant 0 : i32
    %c0_i32_1 = arith.constant 0 : i32
    return %c0_i32, %c0_i32_0 : i32, i32
  }
  func.func @transform_3(%arg0: i32, %arg1: i32, %arg2: i32) -> (i32, i32) {
    %c0_i32 = arith.constant 0 : i32
    %c0_i32_0 = arith.constant 0 : i32
    %c0_i32_1 = arith.constant 0 : i32
    return %c0_i32, %c0_i32_0 : i32, i32
  }
  func.func @transform_4(%arg0: i32, %arg1: i32, %arg2: i32) -> (i32, i32) {
    %c0_i32 = arith.constant 0 : i32
    %c0_i32_0 = arith.constant 0 : i32
    %c0_i32_1 = arith.constant 0 : i32
    return %c0_i32, %c0_i32_0 : i32, i32
  }
  func.func @transform_5(%arg0: i32, %arg1: i32, %arg2: i32) -> (i32, i32) {
    %c0_i32 = arith.constant 0 : i32
    %c0_i32_0 = arith.constant 0 : i32
    %c0_i32_1 = arith.constant 0 : i32
    return %c0_i32, %c0_i32_0 : i32, i32
  }
  func.func @transform_6(%arg0: i32, %arg1: i32, %arg2: i32) -> (i32, i32) {
    %c0_i32 = arith.constant 0 : i32
    %c0_i32_0 = arith.constant 0 : i32
    %c0_i32_1 = arith.constant 0 : i32
    return %c0_i32, %c0_i32_0 : i32, i32
  }
  func.func @transform_7(%arg0: i32, %arg1: i32, %arg2: i32) -> (i32, i32, i32, i32) {
    %c0_i32 = arith.constant 0 : i32
    %c0_i32_0 = arith.constant 0 : i32
    return %arg0, %arg1, %c0_i32, %arg2 : i32, i32, i32, i32
  }
}

</mosaic_0001>

<llo_original>
// kernel: tpu_custom_call.1
$region0: #{tpu_custom_call.1}
  #allocation0 [shape = 'u32[]', space=smem, size = 0x4, offset = 0x4, fixed_abs, tag = 'smem constant byte address 0x4 - core index']
  #allocation1 [shape = 'u32[144,128]{1,0:T(1,128)}', space=vmem, size = 0x12000, scoped, tag = 'internal scratch']
  %s0 = inlined_call_operand.vmem [shape: f32[2,2,16], index: 0, kind: input, shape index: {}]
  %s1 = inlined_call_operand.vmem [shape: f32[1,2,128,1], index: 1, kind: input, shape index: {}]
  %s2 = inlined_call_operand.vmem [shape: f32[128,2], index: 2, kind: input, shape index: {}]
  %s3 = inlined_call_operand.vmem [shape: bf16[128,128], index: 3, kind: input, shape index: {}]
  %s4 = inlined_call_operand.vmem [shape: f32[128,1], index: 4, kind: input, shape index: {}]
  %s5 = inlined_call_operand.vmem [shape: bf16[2,128], index: 5, kind: input, shape index: {}]
  %s6 = inlined_call_operand.vmem [shape: f32[2,1], index: 6, kind: input, shape index: {}]
  %s7 = inlined_call_operand.hbm [shape: f32[1,2,2,16], index: 7, kind: output, shape index: {}]
  %s8 = sld [smem:[#allocation0]]
  $region61: #{tpu_custom_call.1} parent=0
    _
  %s10 = ssub.s32 1, %s8
  %s11 = scalar_select 0, %s10, %s8
  $region1: #{tpu_custom_call.1} parent=0
    #allocation2 [shape = 'u8[2048]{0}', space=vmem, size = 0x800, scoped, tag = 'output window, operand 0']
    #allocation3 [shape = 's32[2]{0}', space=sflag, size = 0x8, scoped, tag = 'scoped memory for tpu_custom_call.1']
    %12 = vsyncpa [#allocation3], 0
    %s13 = scalar_lea.sflag [#allocation3], 1
    %14 = vsyncpa %s13, 0
    loop: start=0, step=1, limit=4
    $region2: #{tpu_custom_call.1} parent=1 // loop_pre_header
      _
    $region3: #{tpu_custom_call.1} parent=1 // loop_header
      %s16 = sphi 0, %s20
      %p17 = scmp.ge.s32.totalorder %s16, 4
      %s23 = sphi 0, %s42
      %s24 = sphi 0, %s38
      %s25 = sphi 0, %s34
      %s26 = sphi 0, %s23
      %s27 = sphi 0, %s24
      %s28 = sphi 0, %s25
      %s29 = sphi 0, %s26
      %s30 = sphi 0, %s27
      %s31 = sphi 0, %s28
      %s47 = sphi 0, %s49
      %s50 = sphi 0, %s47
      %s51 = sphi 0, %s50
      %s67 = sphi 0, %s51
      %s75 = sphi 0, %s77
      %s78 = sphi 0, %s75
      %s79 = sphi 0, %s78
      %s95 = sphi 0, %s79
      %s99 = sphi 0, %s99
      %s101 = sphi 0, %s99
      %s102 = sphi 0, %s101
      %s116 = sphi 0, %s102
      %s120 = sphi 0, %s120
      %s122 = sphi 0, %s120
      %s123 = sphi 0, %s122
      %s137 = sphi 0, %s123
      %s141 = sphi 0, %s141
      %s143 = sphi 0, %s141
      %s144 = sphi 0, %s143
      %s158 = sphi 0, %s144
      %s162 = sphi 0, %s162
      %s164 = sphi 0, %s162
      %s165 = sphi 0, %s164
      %s179 = sphi 0, %s165
      %s183 = sphi 0, %s183
      %s185 = sphi 0, %s183
      %s186 = sphi 0, %s185
      %s200 = sphi 0, %s186
      %s210 = sphi 0, %s212
      %s213 = sphi 0, %s210
      %s214 = sphi 0, %s213
      %s230 = sphi 0, %s214
    $region4: #{tpu_custom_call.1} parent=1 // loop_header_branch
      %19 = sbr.rel (%p17) target = $region8
    $region5: #{tpu_custom_call.1} parent=1 // loop_body
      %s21 = ssub.s32 %s16, 1
      %s22 = ssub.s32 %s16, 2
      %s32 = sadd.s32 1, %s25
      %p33 = scmp.ge.s32.totalorder %s32, 1
      %s34 = scalar_select %p33, 0, %s32
      %s35 = sadd.s32 1, %s24
      %s36 = scalar_select %p33, %s35, %s24
      %p37 = scmp.ge.s32.totalorder %s36, 2
      %s38 = scalar_select %p37, 0, %s36
      %s39 = sadd.s32 1, %s23
      %s40 = scalar_select %p37, %s39, %s23
      %p41 = scmp.ge.s32.totalorder %s40, 1
      %s42 = scalar_select %p41, 0, %s40
      %s43 = ssub.s32 %s24, %s38
      %s44 = ssub.s32 %s25, %s34
      %s45 = sor.u32 %s43, %s44
      %p46 = scmp.eq.s32.totalorder %s45, 0
      %s48 = sadd.s32 %s47, 1
      %s49 = scalar_select %p46, %s47, %s48
      %p52 = pneg %p46
      %p53 = scmp.eq.s32.totalorder %s16, 1
      %p54 = por %p52, %p53
      %p55 = scmp.ne.s32.totalorder %s47, %s50
      %p56 = scmp.eq.s32.totalorder %s16, 0
      %p57 = por %p55, %p56
      %p58 = scmp.ne.s32.totalorder %s47, %s50
      %p59 = scmp.eq.s32.totalorder %s21, 1
      %p60 = por %p58, %p59
      %p61 = scmp.ne.s32.totalorder %s50, %s51
      %p62 = scmp.eq.s32.totalorder %s21, 0
      %p63 = por %p61, %p62
      %p64 = scmp.ne.s32.totalorder %s50, %s51
      %p65 = scmp.eq.s32.totalorder %s22, 1
      %p66 = por %p64, %p65
      %p68 = scmp.ne.s32.totalorder %s51, %s67
      %p69 = scmp.eq.s32.totalorder %s22, 0
      %p70 = por %p68, %p69
      %s71 = ssub.s32 %s23, %s42
      %s72 = ssub.s32 %s24, %s38
      %s73 = sor.u32 %s71, %s72
      %p74 = scmp.eq.s32.totalorder %s73, 0
      %s76 = sadd.s32 %s75, 1
      %s77 = scalar_select %p74, %s75, %s76
      %p80 = pneg %p74
      %p81 = scmp.eq.s32.totalorder %s16, 1
      %p82 = por %p80, %p81
      %p83 = scmp.ne.s32.totalorder %s75, %s78
      %p84 = scmp.eq.s32.totalorder %s16, 0
      %p85 = por %p83, %p84
      %p86 = scmp.ne.s32.totalorder %s75, %s78
      %p87 = scmp.eq.s32.totalorder %s21, 1
      %p88 = por %p86, %p87
      %p89 = scmp.ne.s32.totalorder %s78, %s79
      %p90 = scmp.eq.s32.totalorder %s21, 0
      %p91 = por %p89, %p90
      %p92 = scmp.ne.s32.totalorder %s78, %s79
      %p93 = scmp.eq.s32.totalorder %s22, 1
      %p94 = por %p92, %p93
      %p96 = scmp.ne.s32.totalorder %s79, %s95
      %p97 = scmp.eq.s32.totalorder %s22, 0
      %p98 = por %p96, %p97
      %s100 = sadd.s32 %s99, 1
      %p103 = scmp.eq.s32.totalorder %s16, 1
      %p104 = scmp.ne.s32.totalorder %s99, %s101
      %p105 = scmp.eq.s32.totalorder %s16, 0
      %p106 = por %p104, %p105
      %p107 = scmp.ne.s32.totalorder %s99, %s101
      %p108 = scmp.eq.s32.totalorder %s21, 1
      %p109 = por %p107, %p108
      %p110 = scmp.ne.s32.totalorder %s101, %s102
      %p111 = scmp.eq.s32.totalorder %s21, 0
      %p112 = por %p110, %p111
      %p113 = scmp.ne.s32.totalorder %s101, %s102
      %p114 = scmp.eq.s32.totalorder %s22, 1
      %p115 = por %p113, %p114
      %p117 = scmp.ne.s32.totalorder %s102, %s116
      %p118 = scmp.eq.s32.totalorder %s22, 0
      %p119 = por %p117, %p118
      %s121 = sadd.s32 %s120, 1
      %p124 = scmp.eq.s32.totalorder %s16, 1
      %p125 = scmp.ne.s32.totalorder %s120, %s122
      %p126 = scmp.eq.s32.totalorder %s16, 0
      %p127 = por %p125, %p126
      %p128 = scmp.ne.s32.totalorder %s120, %s122
      %p129 = scmp.eq.s32.totalorder %s21, 1
      %p130 = por %p128, %p129
      %p131 = scmp.ne.s32.totalorder %s122, %s123
      %p132 = scmp.eq.s32.totalorder %s21, 0
      %p133 = por %p131, %p132
      %p134 = scmp.ne.s32.totalorder %s122, %s123
      %p135 = scmp.eq.s32.totalorder %s22, 1
      %p136 = por %p134, %p135
      %p138 = scmp.ne.s32.totalorder %s123, %s137
      %p139 = scmp.eq.s32.totalorder %s22, 0
      %p140 = por %p138, %p139
      %s142 = sadd.s32 %s141, 1
      %p145 = scmp.eq.s32.totalorder %s16, 1
      %p146 = scmp.ne.s32.totalorder %s141, %s143
      %p147 = scmp.eq.s32.totalorder %s16, 0
      %p148 = por %p146, %p147
      %p149 = scmp.ne.s32.totalorder %s141, %s143
      %p150 = scmp.eq.s32.totalorder %s21, 1
      %p151 = por %p149, %p150
      %p152 = scmp.ne.s32.totalorder %s143, %s144
      %p153 = scmp.eq.s32.totalorder %s21, 0
      %p154 = por %p152, %p153
      %p155 = scmp.ne.s32.totalorder %s143, %s144
      %p156 = scmp.eq.s32.totalorder %s22, 1
      %p157 = por %p155, %p156
      %p159 = scmp.ne.s32.totalorder %s144, %s158
      %p160 = scmp.eq.s32.totalorder %s22, 0
      %p161 = por %p159, %p160
      %s163 = sadd.s32 %s162, 1
      %p166 = scmp.eq.s32.totalorder %s16, 1
      %p167 = scmp.ne.s32.totalorder %s162, %s164
      %p168 = scmp.eq.s32.totalorder %s16, 0
      %p169 = por %p167, %p168
      %p170 = scmp.ne.s32.totalorder %s162, %s164
      %p171 = scmp.eq.s32.totalorder %s21, 1
      %p172 = por %p170, %p171
      %p173 = scmp.ne.s32.totalorder %s164, %s165
      %p174 = scmp.eq.s32.totalorder %s21, 0
      %p175 = por %p173, %p174
      %p176 = scmp.ne.s32.totalorder %s164, %s165
      %p177 = scmp.eq.s32.totalorder %s22, 1
      %p178 = por %p176, %p177
      %p180 = scmp.ne.s32.totalorder %s165, %s179
      %p181 = scmp.eq.s32.totalorder %s22, 0
      %p182 = por %p180, %p181
      %s184 = sadd.s32 %s183, 1
      %p187 = scmp.eq.s32.totalorder %s16, 1
      %p188 = scmp.ne.s32.totalorder %s183, %s185
      %p189 = scmp.eq.s32.totalorder %s16, 0
      %p190 = por %p188, %p189
      %p191 = scmp.ne.s32.totalorder %s183, %s185
      %p192 = scmp.eq.s32.totalorder %s21, 1
      %p193 = por %p191, %p192
      %p194 = scmp.ne.s32.totalorder %s185, %s186
      %p195 = scmp.eq.s32.totalorder %s21, 0
      %p196 = por %p194, %p195
      %p197 = scmp.ne.s32.totalorder %s185, %s186
      %p198 = scmp.eq.s32.totalorder %s22, 1
      %p199 = por %p197, %p198
      %p201 = scmp.ne.s32.totalorder %s186, %s200
      %p202 = scmp.eq.s32.totalorder %s22, 0
      %p203 = por %p201, %p202
      %s204 = ssub.s32 %s23, %s42
      %s205 = ssub.s32 %s24, %s38
      %s206 = sor.u32 %s204, %s205
      %s207 = ssub.s32 %s25, %s34
      %s208 = sor.u32 %s206, %s207
      %p209 = scmp.eq.s32.totalorder %s208, 0
      %s211 = sadd.s32 %s210, 1
      %s212 = scalar_select %p209, %s210, %s211
      %p215 = pneg %p209
      %p216 = scmp.eq.s32.totalorder %s16, 1
      %p217 = por %p215, %p216
      %p218 = scmp.ne.s32.totalorder %s210, %s213
      %p219 = scmp.eq.s32.totalorder %s16, 0
      %p220 = por %p218, %p219
      %p221 = scmp.ne.s32.totalorder %s210, %s213
      %p222 = scmp.eq.s32.totalorder %s21, 1
      %p223 = por %p221, %p222
      %p224 = scmp.ne.s32.totalorder %s213, %s214
      %p225 = scmp.eq.s32.totalorder %s21, 0
      %p226 = por %p224, %p225
      %p227 = scmp.ne.s32.totalorder %s213, %s214
      %p228 = scmp.eq.s32.totalorder %s22, 1
      %p229 = por %p227, %p228
      %p231 = scmp.ne.s32.totalorder %s214, %s230
      %p232 = scmp.eq.s32.totalorder %s22, 0
      %p233 = por %p231, %p232
      %p234 = scmp.le.s32.totalorder 1, %s16
      %p235 = scmp.lt.s32.totalorder %s16, 3
      %p236 = pnand %p234, %p235
      %p237 = pneg %p236
      // Predicated region
      $region9: #{tpu_custom_call.1} parent=5 // pred_check
        _
      $region10: #{tpu_custom_call.1} parent=5 // pred_check_branch
        %239 = sbr.rel (%p236) target = $region12
      $region11: #{tpu_custom_call.1} parent=5 // pred_region
        %s240 = ssub.s32 %s16, 1
        // Predicated region
        $region13: #{tpu_custom_call.1} parent=11 // pred_check
          %p241 = pneg %p112
        $region14: #{tpu_custom_call.1} parent=11 // pred_check_branch
          %243 = sbr.rel (%p241) target = $region16
        $region15: #{tpu_custom_call.1} parent=11 // pred_region
          _
        $region16: #{tpu_custom_call.1} parent=11 // pred_fallthru
          _
        // Predicated region
        $region17: #{tpu_custom_call.1} parent=11 // pred_check
          %p244 = pneg %p133
        $region18: #{tpu_custom_call.1} parent=11 // pred_check_branch
          %246 = sbr.rel (%p244) target = $region20
        $region19: #{tpu_custom_call.1} parent=11 // pred_region
          _
        $region20: #{tpu_custom_call.1} parent=11 // pred_fallthru
          _
        // Predicated region
        $region21: #{tpu_custom_call.1} parent=11 // pred_check
          %p247 = pneg %p154
        $region22: #{tpu_custom_call.1} parent=11 // pred_check_branch
          %249 = sbr.rel (%p247) target = $region24
        $region23: #{tpu_custom_call.1} parent=11 // pred_region
          _
        $region24: #{tpu_custom_call.1} parent=11 // pred_fallthru
          _
        // Predicated region
        $region25: #{tpu_custom_call.1} parent=11 // pred_check
          %p250 = pneg %p175
        $region26: #{tpu_custom_call.1} parent=11 // pred_check_branch
          %252 = sbr.rel (%p250) target = $region28
        $region27: #{tpu_custom_call.1} parent=11 // pred_region
          _
        $region28: #{tpu_custom_call.1} parent=11 // pred_fallthru
          _
        // Predicated region
        $region29: #{tpu_custom_call.1} parent=11 // pred_check
          %p253 = pneg %p196
        $region30: #{tpu_custom_call.1} parent=11 // pred_check_branch
          %255 = sbr.rel (%p253) target = $region32
        $region31: #{tpu_custom_call.1} parent=11 // pred_region
          _
        $region32: #{tpu_custom_call.1} parent=11 // pred_fallthru
          _
      $region12: #{tpu_custom_call.1} parent=5 // pred_fallthru
        _
      %p256 = scmp.lt.s32.totalorder %s16, 2
      // Predicated region
      $region33: #{tpu_custom_call.1} parent=5 // pred_check
        %p257 = pneg %p256
      $region34: #{tpu_custom_call.1} parent=5 // pred_check_branch
        %259 = sbr.rel (%p257) target = $region36
      $region35: #{tpu_custom_call.1} parent=5 // pred_region
        // Predicated region
        $region37: #{tpu_custom_call.1} parent=35 // pred_check
          %p260 = pneg %p57
        $region38: #{tpu_custom_call.1} parent=35 // pred_check_branch
          %262 = sbr.rel (%p260) target = $region40
        $region39: #{tpu_custom_call.1} parent=35 // pred_region
          %p263 = scmp.lt.s32.totalorder %s24, 1
          %s264 = scalar_select %p263, %s24, 1
          %p265 = scmp.lt.s32.totalorder %s25, 0
          %s266 = scalar_select %p265, %s25, 0
          %s267 = sadd.s32 %s266, %s264
          %s268 = smul.addr %s267, 2
          %s269 = scalar_lea.vmem %s0, %s268
        $region40: #{tpu_custom_call.1} parent=35 // pred_fallthru
          _
        // Predicated region
        $region41: #{tpu_custom_call.1} parent=35 // pred_check
          %p270 = pneg %p85
        $region42: #{tpu_custom_call.1} parent=35 // pred_check_branch
          %272 = sbr.rel (%p270) target = $region44
        $region43: #{tpu_custom_call.1} parent=35 // pred_region
          %p273 = scmp.lt.s32.totalorder %s23, 0
          %s274 = scalar_select %p273, %s23, 0
          %p275 = scmp.lt.s32.totalorder %s24, 1
          %s276 = scalar_select %p275, %s24, 1
          %s277 = smul.addr %s276, 16
          %s278 = smul.addr %s274, 32
          %s279 = sadd.s32 %s277, %s278
          %s280 = smul.addr %s279, 8
          %s281 = scalar_lea.vmem %s1, %s280
        $region44: #{tpu_custom_call.1} parent=35 // pred_fallthru
          _
      $region36: #{tpu_custom_call.1} parent=5 // pred_fallthru
        _
      %p282 = scmp.le.s32.totalorder 1, %s16
      %p283 = scmp.lt.s32.totalorder %s16, 3
      %p284 = pnand %p282, %p283
      %p285 = pneg %p284
      // Predicated region
      $region45: #{tpu_custom_call.1} parent=5 // pred_check
        _
      $region46: #{tpu_custom_call.1} parent=5 // pred_check_branch
        %287 = sbr.rel (%p284) target = $region48
      $region47: #{tpu_custom_call.1} parent=5 // pred_region
        %s288 = ssub.s32 %s16, 1
        %p289 = scmp.lt.s32.totalorder %s27, 1
        %s290 = scalar_select %p289, %s27, 1
        %p291 = scmp.lt.s32.totalorder %s28, 0
        %s292 = scalar_select %p291, %s28, 0
        %s293 = sadd.s32 %s292, %s290
        %s294 = smul.addr %s293, 2
        %s295 = scalar_lea.vmem %s0, %s294
        %p296 = pneg %p63
        %p297 = pneg %p60
        %p298 = scmp.lt.s32.totalorder %s26, 0
        %s299 = scalar_select %p298, %s26, 0
        %p300 = scmp.lt.s32.totalorder %s27, 1
        %s301 = scalar_select %p300, %s27, 1
        %s302 = smul.addr %s301, 16
        %s303 = smul.addr %s299, 32
        %s304 = sadd.s32 %s302, %s303
        %s305 = smul.addr %s304, 8
        %s306 = scalar_lea.vmem %s1, %s305
        %p307 = pneg %p91
        %p308 = pneg %p88
        %p309 = pneg %p112
        %p310 = pneg %p109
        %p311 = pneg %p133
        %p312 = pneg %p130
        %p313 = pneg %p154
        %p314 = pneg %p151
        %p315 = pneg %p175
        %p316 = pneg %p172
        %p317 = pneg %p196
        %p318 = pneg %p193
        %p319 = pneg %p226
        %p320 = pneg %p223
        %s321 = sand.u32 %s213, 1
        %s322 = scalar_lea.sflag [#allocation3], %s321
        %s323 = sand.u32 %s213, 1
        %s324 = smul.addr %s323, 2
        %s325 = scalar_lea.vmem [#allocation2], %s324
        %p326 = scmp.lt.s32.totalorder %s27, 1
        %s327 = scalar_select %p326, %s27, 1
        %p328 = scmp.lt.s32.totalorder %s28, 0
        %s329 = scalar_select %p328, %s28, 0
        %s330 = sadd.s32 %s329, %s327
        %s331 = smul.addr %s330, 2
        %s332 = scalar_lea.vmem %s0, %s331
        %p333 = scmp.lt.s32.totalorder %s26, 0
        %s334 = scalar_select %p333, %s26, 0
        %p335 = scmp.lt.s32.totalorder %s27, 1
        %s336 = scalar_select %p335, %s27, 1
        %s337 = smul.addr %s336, 16
        %s338 = smul.addr %s334, 32
        %s339 = sadd.s32 %s337, %s338
        %s340 = smul.addr %s339, 8
        %s341 = scalar_lea.vmem %s1, %s340
        %v343 = vld [vmem:[%s332] sm:$0x3]
        %v344 = vld [vmem:[%s2] sm:$0xff]
        %v345 = vld [vmem:[%s2 + $0x8] sm:$0xff]
        %v346 = vld [vmem:[%s2 + $0x10] sm:$0xff]
        %v347 = vld [vmem:[%s2 + $0x18] sm:$0xff]
        %v348 = vld [vmem:[%s2 + $0x20] sm:$0xff]
        %v349 = vld [vmem:[%s2 + $0x28] sm:$0xff]
        %v350 = vld [vmem:[%s2 + $0x30] sm:$0xff]
        %v351 = vld [vmem:[%s2 + $0x38] sm:$0xff]
        %v352 = vld [vmem:[%s2 + $0x40] sm:$0xff]
        %v353 = vld [vmem:[%s2 + $0x48] sm:$0xff]
        %v354 = vld [vmem:[%s2 + $0x50] sm:$0xff]
        %v355 = vld [vmem:[%s2 + $0x58] sm:$0xff]
        %v356 = vld [vmem:[%s2 + $0x60] sm:$0xff]
        %v357 = vld [vmem:[%s2 + $0x68] sm:$0xff]
        %v358 = vld [vmem:[%s2 + $0x70] sm:$0xff]
        %v359 = vld [vmem:[%s2 + $0x78] sm:$0xff]
        %361 = vset.pattern.permute.xlu0 0
        %362 = vperm.xlu0 %361, %v344
        %v363 = vpop.permute.xlu0 %362
        %366 = vset.pattern.permute.xlu0 0
        %367 = vperm.xlu0 %366, %v345
        %v368 = vpop.permute.xlu0 %367
        %371 = vset.pattern.permute.xlu0 0
        %372 = vperm.xlu0 %371, %v346
        %v373 = vpop.permute.xlu0 %372
        %376 = vset.pattern.permute.xlu0 0
        %377 = vperm.xlu0 %376, %v347
        %v378 = vpop.permute.xlu0 %377
        %381 = vset.pattern.permute.xlu0 0
        %382 = vperm.xlu0 %381, %v348
        %v383 = vpop.permute.xlu0 %382
        %386 = vset.pattern.permute.xlu0 0
        %387 = vperm.xlu0 %386, %v349
        %v388 = vpop.permute.xlu0 %387
        %391 = vset.pattern.permute.xlu0 0
        %392 = vperm.xlu0 %391, %v350
        %v393 = vpop.permute.xlu0 %392
        %396 = vset.pattern.permute.xlu0 0
        %397 = vperm.xlu0 %396, %v351
        %v398 = vpop.permute.xlu0 %397
        %401 = vset.pattern.permute.xlu0 0
        %402 = vperm.xlu0 %401, %v352
        %v403 = vpop.permute.xlu0 %402
        %406 = vset.pattern.permute.xlu0 0
        %407 = vperm.xlu0 %406, %v353
        %v408 = vpop.permute.xlu0 %407
        %411 = vset.pattern.permute.xlu0 0
        %412 = vperm.xlu0 %411, %v354
        %v413 = vpop.permute.xlu0 %412
        %416 = vset.pattern.permute.xlu0 0
        %417 = vperm.xlu0 %416, %v355
        %v418 = vpop.permute.xlu0 %417
        %421 = vset.pattern.permute.xlu0 0
        %422 = vperm.xlu0 %421, %v356
        %v423 = vpop.permute.xlu0 %422
        %426 = vset.pattern.permute.xlu0 0
        %427 = vperm.xlu0 %426, %v357
        %v428 = vpop.permute.xlu0 %427
        %431 = vset.pattern.permute.xlu0 0
        %432 = vperm.xlu0 %431, %v358
        %v433 = vpop.permute.xlu0 %432
        %436 = vset.pattern.permute.xlu0 0
        %437 = vperm.xlu0 %436, %v359
        %v438 = vpop.permute.xlu0 %437
        %v440 = vlaneseq
        %v441 = vshrl.u32 %v440, 7
        %v442 = vsub.s32 0, %v441
        %v443 = vrot.slane %v343, %v442
        %v444 = vmul.f32 %v363, %v443
        %v445 = vmul.f32 %v368, %v443
        %v446 = vmul.f32 %v373, %v443
        %v447 = vmul.f32 %v378, %v443
        %v448 = vmul.f32 %v383, %v443
        %v449 = vmul.f32 %v388, %v443
        %v450 = vmul.f32 %v393, %v443
        %v451 = vmul.f32 %v398, %v443
        %v452 = vmul.f32 %v403, %v443
        %v453 = vmul.f32 %v408, %v443
        %v454 = vmul.f32 %v413, %v443
        %v455 = vmul.f32 %v418, %v443
        %v456 = vmul.f32 %v423, %v443
        %v457 = vmul.f32 %v428, %v443
        %v458 = vmul.f32 %v433, %v443
        %v459 = vmul.f32 %v438, %v443
        %460 = vset.pattern.permute.xlu0 1
        %461 = vperm.xlu0 %460, %v344
        %v462 = vpop.permute.xlu0 %461
        %464 = vset.pattern.permute.xlu0 1
        %465 = vperm.xlu0 %464, %v345
        %v466 = vpop.permute.xlu0 %465
        %468 = vset.pattern.permute.xlu0 1
        %469 = vperm.xlu0 %468, %v346
        %v470 = vpop.permute.xlu0 %469
        %472 = vset.pattern.permute.xlu0 1
        %473 = vperm.xlu0 %472, %v347
        %v474 = vpop.permute.xlu0 %473
        %476 = vset.pattern.permute.xlu0 1
        %477 = vperm.xlu0 %476, %v348
        %v478 = vpop.permute.xlu0 %477
        %480 = vset.pattern.permute.xlu0 1
        %481 = vperm.xlu0 %480, %v349
        %v482 = vpop.permute.xlu0 %481
        %484 = vset.pattern.permute.xlu0 1
        %485 = vperm.xlu0 %484, %v350
        %v486 = vpop.permute.xlu0 %485
        %488 = vset.pattern.permute.xlu0 1
        %489 = vperm.xlu0 %488, %v351
        %v490 = vpop.permute.xlu0 %489
        %492 = vset.pattern.permute.xlu0 1
        %493 = vperm.xlu0 %492, %v352
        %v494 = vpop.permute.xlu0 %493
        %496 = vset.pattern.permute.xlu0 1
        %497 = vperm.xlu0 %496, %v353
        %v498 = vpop.permute.xlu0 %497
        %500 = vset.pattern.permute.xlu0 1
        %501 = vperm.xlu0 %500, %v354
        %v502 = vpop.permute.xlu0 %501
        %504 = vset.pattern.permute.xlu0 1
        %505 = vperm.xlu0 %504, %v355
        %v506 = vpop.permute.xlu0 %505
        %508 = vset.pattern.permute.xlu0 1
        %509 = vperm.xlu0 %508, %v356
        %v510 = vpop.permute.xlu0 %509
        %512 = vset.pattern.permute.xlu0 1
        %513 = vperm.xlu0 %512, %v357
        %v514 = vpop.permute.xlu0 %513
        %516 = vset.pattern.permute.xlu0 1
        %517 = vperm.xlu0 %516, %v358
        %v518 = vpop.permute.xlu0 %517
        %520 = vset.pattern.permute.xlu0 1
        %521 = vperm.xlu0 %520, %v359
        %v522 = vpop.permute.xlu0 %521
        %v524 = vlaneseq
        %v525 = vshrl.u32 %v524, 7
        %v526 = vsub.s32 1, %v525
        %v527 = vrot.slane %v343, %v526
        %v528 = vmul.f32 %v462, %v527
        %v529 = vmul.f32 %v466, %v527
        %v530 = vmul.f32 %v470, %v527
        %v531 = vmul.f32 %v474, %v527
        %v532 = vmul.f32 %v478, %v527
        %v533 = vmul.f32 %v482, %v527
        %v534 = vmul.f32 %v486, %v527
        %v535 = vmul.f32 %v490, %v527
        %v536 = vmul.f32 %v494, %v527
        %v537 = vmul.f32 %v498, %v527
        %v538 = vmul.f32 %v502, %v527
        %v539 = vmul.f32 %v506, %v527
        %v540 = vmul.f32 %v510, %v527
        %v541 = vmul.f32 %v514, %v527
        %v542 = vmul.f32 %v518, %v527
        %v543 = vmul.f32 %v522, %v527
        %v544 = vadd.f32 %v444, %v528
        %v545 = vadd.f32 %v445, %v529
        %v546 = vadd.f32 %v446, %v530
        %v547 = vadd.f32 %v447, %v531
        %v548 = vadd.f32 %v448, %v532
        %v549 = vadd.f32 %v449, %v533
        %v550 = vadd.f32 %v450, %v534
        %v551 = vadd.f32 %v451, %v535
        %v552 = vadd.f32 %v452, %v536
        %v553 = vadd.f32 %v453, %v537
        %v554 = vadd.f32 %v454, %v538
        %v555 = vadd.f32 %v455, %v539
        %v556 = vadd.f32 %v456, %v540
        %v557 = vadd.f32 %v457, %v541
        %v558 = vadd.f32 %v458, %v542
        %v559 = vadd.f32 %v459, %v543
        %v560 = vld [vmem:[%s341] sm:$0xff]
        %v561 = vld [vmem:[%s341 + $0x8] sm:$0xff]
        %v562 = vld [vmem:[%s341 + $0x10] sm:$0xff]
        %v563 = vld [vmem:[%s341 + $0x18] sm:$0xff]
        %v564 = vld [vmem:[%s341 + $0x20] sm:$0xff]
        %v565 = vld [vmem:[%s341 + $0x28] sm:$0xff]
        %v566 = vld [vmem:[%s341 + $0x30] sm:$0xff]
        %v567 = vld [vmem:[%s341 + $0x38] sm:$0xff]
        %v568 = vld [vmem:[%s341 + $0x40] sm:$0xff]
        %v569 = vld [vmem:[%s341 + $0x48] sm:$0xff]
        %v570 = vld [vmem:[%s341 + $0x50] sm:$0xff]
        %v571 = vld [vmem:[%s341 + $0x58] sm:$0xff]
        %v572 = vld [vmem:[%s341 + $0x60] sm:$0xff]
        %v573 = vld [vmem:[%s341 + $0x68] sm:$0xff]
        %v574 = vld [vmem:[%s341 + $0x70] sm:$0xff]
        %v575 = vld [vmem:[%s341 + $0x78] sm:$0xff]
        %577 = vset.pattern.permute.xlu0 0
        %578 = vperm.xlu0 %577, %v560
        %v579 = vpop.permute.xlu0 %578
        %582 = vset.pattern.permute.xlu0 0
        %583 = vperm.xlu0 %582, %v561
        %v584 = vpop.permute.xlu0 %583
        %587 = vset.pattern.permute.xlu0 0
        %588 = vperm.xlu0 %587, %v562
        %v589 = vpop.permute.xlu0 %588
        %592 = vset.pattern.permute.xlu0 0
        %593 = vperm.xlu0 %592, %v563
        %v594 = vpop.permute.xlu0 %593
        %597 = vset.pattern.permute.xlu0 0
        %598 = vperm.xlu0 %597, %v564
        %v599 = vpop.permute.xlu0 %598
        %602 = vset.pattern.permute.xlu0 0
        %603 = vperm.xlu0 %602, %v565
        %v604 = vpop.permute.xlu0 %603
        %607 = vset.pattern.permute.xlu0 0
        %608 = vperm.xlu0 %607, %v566
        %v609 = vpop.permute.xlu0 %608
        %612 = vset.pattern.permute.xlu0 0
        %613 = vperm.xlu0 %612, %v567
        %v614 = vpop.permute.xlu0 %613
        %617 = vset.pattern.permute.xlu0 0
        %618 = vperm.xlu0 %617, %v568
        %v619 = vpop.permute.xlu0 %618
        %622 = vset.pattern.permute.xlu0 0
        %623 = vperm.xlu0 %622, %v569
        %v624 = vpop.permute.xlu0 %623
        %627 = vset.pattern.permute.xlu0 0
        %628 = vperm.xlu0 %627, %v570
        %v629 = vpop.permute.xlu0 %628
        %632 = vset.pattern.permute.xlu0 0
        %633 = vperm.xlu0 %632, %v571
        %v634 = vpop.permute.xlu0 %633
        %637 = vset.pattern.permute.xlu0 0
        %638 = vperm.xlu0 %637, %v572
        %v639 = vpop.permute.xlu0 %638
        %642 = vset.pattern.permute.xlu0 0
        %643 = vperm.xlu0 %642, %v573
        %v644 = vpop.permute.xlu0 %643
        %647 = vset.pattern.permute.xlu0 0
        %648 = vperm.xlu0 %647, %v574
        %v649 = vpop.permute.xlu0 %648
        %652 = vset.pattern.permute.xlu0 0
        %653 = vperm.xlu0 %652, %v575
        %v654 = vpop.permute.xlu0 %653
        %v656 = vadd.f32 %v544, %v579
        %v657 = vadd.f32 %v545, %v584
        %v658 = vadd.f32 %v546, %v589
        %v659 = vadd.f32 %v547, %v594
        %v660 = vadd.f32 %v548, %v599
        %v661 = vadd.f32 %v549, %v604
        %v662 = vadd.f32 %v550, %v609
        %v663 = vadd.f32 %v551, %v614
        %v664 = vadd.f32 %v552, %v619
        %v665 = vadd.f32 %v553, %v624
        %v666 = vadd.f32 %v554, %v629
        %v667 = vadd.f32 %v555, %v634
        %v668 = vadd.f32 %v556, %v639
        %v669 = vadd.f32 %v557, %v644
        %v670 = vadd.f32 %v558, %v649
        %v671 = vadd.f32 %v559, %v654
        %v672 = vmax.f32 %v656, 0.0
        %v673 = vmax.f32 %v657, 0.0
        %v674 = vmax.f32 %v658, 0.0
        %v675 = vmax.f32 %v659, 0.0
        %v676 = vmax.f32 %v660, 0.0
        %v677 = vmax.f32 %v661, 0.0
        %v678 = vmax.f32 %v662, 0.0
        %v679 = vmax.f32 %v663, 0.0
        %v680 = vmax.f32 %v664, 0.0
        %v681 = vmax.f32 %v665, 0.0
        %v682 = vmax.f32 %v666, 0.0
        %v683 = vmax.f32 %v667, 0.0
        %v684 = vmax.f32 %v668, 0.0
        %v685 = vmax.f32 %v669, 0.0
        %v686 = vmax.f32 %v670, 0.0
        %v687 = vmax.f32 %v671, 0.0
        %v688 = vld [vmem:[%s3] sm:$0xf]
        %v689 = vld [vmem:[%s3 + $0x4] sm:$0xf]
        %v690 = vld [vmem:[%s3 + $0x8] sm:$0xf]
        %v691 = vld [vmem:[%s3 + $0xc] sm:$0xf]
        %v692 = vld [vmem:[%s3 + $0x10] sm:$0xf]
        %v693 = vld [vmem:[%s3 + $0x14] sm:$0xf]
        %v694 = vld [vmem:[%s3 + $0x18] sm:$0xf]
        %v695 = vld [vmem:[%s3 + $0x1c] sm:$0xf]
        %v696 = vld [vmem:[%s3 + $0x20] sm:$0xf]
        %v697 = vld [vmem:[%s3 + $0x24] sm:$0xf]
        %v698 = vld [vmem:[%s3 + $0x28] sm:$0xf]
        %v699 = vld [vmem:[%s3 + $0x2c] sm:$0xf]
        %v700 = vld [vmem:[%s3 + $0x30] sm:$0xf]
        %v701 = vld [vmem:[%s3 + $0x34] sm:$0xf]
        %v702 = vld [vmem:[%s3 + $0x38] sm:$0xf]
        %v703 = vld [vmem:[%s3 + $0x3c] sm:$0xf]
        %v704 = vpack.c.bf16 %v673, %v672
        %v705 = vpack.c.bf16 %v675, %v674
        %v706 = vpack.c.bf16 %v677, %v676
        %v707 = vpack.c.bf16 %v679, %v678
        %v708 = vpack.c.bf16 %v681, %v680
        %v709 = vpack.c.bf16 %v683, %v682
        %v710 = vpack.c.bf16 %v685, %v684
        %v711 = vpack.c.bf16 %v687, %v686
        %v712 = vld [vmem:[%s4] sm:$0xff]
        %v713 = vld [vmem:[%s4 + $0x8] sm:$0xff]
        %v714 = vld [vmem:[%s4 + $0x10] sm:$0xff]
        %v715 = vld [vmem:[%s4 + $0x18] sm:$0xff]
        %v716 = vld [vmem:[%s4 + $0x20] sm:$0xff]
        %v717 = vld [vmem:[%s4 + $0x28] sm:$0xff]
        %v718 = vld [vmem:[%s4 + $0x30] sm:$0xff]
        %v719 = vld [vmem:[%s4 + $0x38] sm:$0xff]
        %v720 = vld [vmem:[%s4 + $0x40] sm:$0xff]
        %v721 = vld [vmem:[%s4 + $0x48] sm:$0xff]
        %v722 = vld [vmem:[%s4 + $0x50] sm:$0xff]
        %v723 = vld [vmem:[%s4 + $0x58] sm:$0xff]
        %v724 = vld [vmem:[%s4 + $0x60] sm:$0xff]
        %v725 = vld [vmem:[%s4 + $0x68] sm:$0xff]
        %v726 = vld [vmem:[%s4 + $0x70] sm:$0xff]
        %v727 = vld [vmem:[%s4 + $0x78] sm:$0xff]
        %729 = vset.pattern.permute.xlu0 0
        %730 = vperm.xlu0 %729, %v712
        %v731 = vpop.permute.xlu0 %730
        %734 = vset.pattern.permute.xlu0 0
        %735 = vperm.xlu0 %734, %v713
        %v736 = vpop.permute.xlu0 %735
        %739 = vset.pattern.permute.xlu0 0
        %740 = vperm.xlu0 %739, %v714
        %v741 = vpop.permute.xlu0 %740
        %744 = vset.pattern.permute.xlu0 0
        %745 = vperm.xlu0 %744, %v715
        %v746 = vpop.permute.xlu0 %745
        %749 = vset.pattern.permute.xlu0 0
        %750 = vperm.xlu0 %749, %v716
        %v751 = vpop.permute.xlu0 %750
        %754 = vset.pattern.permute.xlu0 0
        %755 = vperm.xlu0 %754, %v717
        %v756 = vpop.permute.xlu0 %755
        %759 = vset.pattern.permute.xlu0 0
        %760 = vperm.xlu0 %759, %v718
        %v761 = vpop.permute.xlu0 %760
        %764 = vset.pattern.permute.xlu0 0
        %765 = vperm.xlu0 %764, %v719
        %v766 = vpop.permute.xlu0 %765
        %769 = vset.pattern.permute.xlu0 0
        %770 = vperm.xlu0 %769, %v720
        %v771 = vpop.permute.xlu0 %770
        %774 = vset.pattern.permute.xlu0 0
        %775 = vperm.xlu0 %774, %v721
        %v776 = vpop.permute.xlu0 %775
        %779 = vset.pattern.permute.xlu0 0
        %780 = vperm.xlu0 %779, %v722
        %v781 = vpop.permute.xlu0 %780
        %784 = vset.pattern.permute.xlu0 0
        %785 = vperm.xlu0 %784, %v723
        %v786 = vpop.permute.xlu0 %785
        %789 = vset.pattern.permute.xlu0 0
        %790 = vperm.xlu0 %789, %v724
        %v791 = vpop.permute.xlu0 %790
        %794 = vset.pattern.permute.xlu0 0
        %795 = vperm.xlu0 %794, %v725
        %v796 = vpop.permute.xlu0 %795
        %799 = vset.pattern.permute.xlu0 0
        %800 = vperm.xlu0 %799, %v726
        %v801 = vpop.permute.xlu0 %800
        %804 = vset.pattern.permute.xlu0 0
        %805 = vperm.xlu0 %804, %v727
        %v806 = vpop.permute.xlu0 %805
        %v824 = vunpack.c.l.b16 %v688
        %v825 = vunpack.c.l.b16 %v689
        %v826 = vunpack.c.l.b16 %v690
        %v827 = vunpack.c.l.b16 %v691
        %v828 = vunpack.c.l.b16 %v692
        %v829 = vunpack.c.l.b16 %v693
        %v830 = vunpack.c.l.b16 %v694
        %v831 = vunpack.c.l.b16 %v695
        %v832 = vunpack.c.l.b16 %v696
        %v833 = vunpack.c.l.b16 %v697
        %v834 = vunpack.c.l.b16 %v698
        %v835 = vunpack.c.l.b16 %v699
        %v836 = vunpack.c.l.b16 %v700
        %v837 = vunpack.c.l.b16 %v701
        %v838 = vunpack.c.l.b16 %v702
        %v839 = vunpack.c.l.b16 %v703
        %v840 = vpack.c.b16 %v825, %v824
        %v841 = vpack.c.b16 %v827, %v826
        %v842 = vpack.c.b16 %v829, %v828
        %v843 = vpack.c.b16 %v831, %v830
        %v844 = vpack.c.b16 %v833, %v832
        %v845 = vpack.c.b16 %v835, %v834
        %v846 = vpack.c.b16 %v837, %v836
        %v847 = vpack.c.b16 %v839, %v838
        %856 = vmatprep.subr.bf16.mxu0 0
        %857 = vmatpush1.bf16.msra.mxu0 %v704
        %858 = vmatprep.subr.bf16.mxu0 0
        %859 = vmatpush1.bf16.msra.mxu0 %v705
        %860 = vmatprep.subr.bf16.mxu0 0
        %861 = vmatpush1.bf16.msra.mxu0 %v706
        %862 = vmatprep.subr.bf16.mxu0 0
        %863 = vmatpush1.bf16.msra.mxu0 %v707
        %864 = vmatprep.subr.bf16.mxu0 0
        %865 = vmatpush1.bf16.msra.mxu0 %v708
        %866 = vmatprep.subr.bf16.mxu0 0
        %867 = vmatpush1.bf16.msra.mxu0 %v709
        %868 = vmatprep.subr.bf16.mxu0 0
        %869 = vmatpush1.bf16.msra.mxu0 %v710
        %870 = vmatprep.subr.bf16.mxu0 0
        %871 = vmatpush1.bf16.msra.mxu0 %v711
        %872 = vmatprep.subr.bf16.mxu0 0
        %873 = vmatpush1.bf16.msra.mxu0 0
        %874 = vmatprep.subr.bf16.mxu0 0
        %875 = vmatpush1.bf16.msra.mxu0 0
        %876 = vmatprep.subr.bf16.mxu0 0
        %877 = vmatpush1.bf16.msra.mxu0 0
        %878 = vmatprep.subr.bf16.mxu0 0
        %879 = vmatpush1.bf16.msra.mxu0 0
        %880 = vmatprep.subr.bf16.mxu0 0
        %881 = vmatpush1.bf16.msra.mxu0 0
        %882 = vmatprep.subr.bf16.mxu0 0
        %883 = vmatpush1.bf16.msra.mxu0 0
        %884 = vmatprep.subr.bf16.mxu0 0
        %885 = vmatpush1.bf16.msra.mxu0 0
        %886 = vmatprep.subr.bf16.mxu0 0
        %887 = vmatpush1.bf16.msra.mxu0 0
        %888 = vmatprep.mubr.bf16.mxu0 0
        %889 = vmatmul.mubr.bf16.gmra.mrb[0].mxu0 %v840
        %v890 = vpop.f32.mrb[0].mxu0
        %v891 = vadd.f32 %v731, %v890
        %v892 = vpop.f32.mrb[0].mxu0
        %v893 = vpop.f32.mrb[0].mxu0
        %v894 = vadd.f32 %v736, %v893
        %v895 = vpop.f32.mrb[0].mxu0
        %896 = vmatprep.mubr.bf16.mxu0 0
        %897 = vmatmul.mubr.bf16.gmra.mrb[0].mxu0 %v841
        %v898 = vpop.f32.mrb[0].mxu0
        %v899 = vadd.f32 %v741, %v898
        %v900 = vpop.f32.mrb[0].mxu0
        %v901 = vpop.f32.mrb[0].mxu0
        %v902 = vadd.f32 %v746, %v901
        %v903 = vpop.f32.mrb[0].mxu0
        %904 = vmatprep.mubr.bf16.mxu0 0
        %905 = vmatmul.mubr.bf16.gmra.mrb[0].mxu0 %v842
        %v906 = vpop.f32.mrb[0].mxu0
        %v907 = vadd.f32 %v751, %v906
        %v908 = vpop.f32.mrb[0].mxu0
        %v909 = vpop.f32.mrb[0].mxu0
        %v910 = vadd.f32 %v756, %v909
        %v911 = vpop.f32.mrb[0].mxu0
        %912 = vmatprep.mubr.bf16.mxu0 0
        %913 = vmatmul.mubr.bf16.gmra.mrb[0].mxu0 %v843
        %v914 = vpop.f32.mrb[0].mxu0
        %v915 = vadd.f32 %v761, %v914
        %v916 = vpop.f32.mrb[0].mxu0
        %v917 = vpop.f32.mrb[0].mxu0
        %v918 = vadd.f32 %v766, %v917
        %v919 = vpop.f32.mrb[0].mxu0
        %920 = vmatprep.mubr.bf16.mxu0 0
        %921 = vmatmul.mubr.bf16.gmra.mrb[0].mxu0 %v844
        %v922 = vpop.f32.mrb[0].mxu0
        %v923 = vadd.f32 %v771, %v922
        %v924 = vpop.f32.mrb[0].mxu0
        %v925 = vpop.f32.mrb[0].mxu0
        %v926 = vadd.f32 %v776, %v925
        %v927 = vpop.f32.mrb[0].mxu0
        %928 = vmatprep.mubr.bf16.mxu0 0
        %929 = vmatmul.mubr.bf16.gmra.mrb[0].mxu0 %v845
        %v930 = vpop.f32.mrb[0].mxu0
        %v931 = vadd.f32 %v781, %v930
        %v932 = vpop.f32.mrb[0].mxu0
        %v933 = vpop.f32.mrb[0].mxu0
        %v934 = vadd.f32 %v786, %v933
        %v935 = vpop.f32.mrb[0].mxu0
        %936 = vmatprep.mubr.bf16.mxu0 0
        %937 = vmatmul.mubr.bf16.gmra.mrb[0].mxu0 %v846
        %v938 = vpop.f32.mrb[0].mxu0
        %v939 = vadd.f32 %v791, %v938
        %v940 = vpop.f32.mrb[0].mxu0
        %v941 = vpop.f32.mrb[0].mxu0
        %v942 = vadd.f32 %v796, %v941
        %v943 = vpop.f32.mrb[0].mxu0
        %944 = vmatprep.mubr.bf16.mxu0 0
        %945 = vmatmul.mubr.bf16.gmra.mrb[0].mxu0 %v847
        %v946 = vpop.f32.mrb[0].mxu0
        %v947 = vadd.f32 %v801, %v946
        %v948 = vpop.f32.mrb[0].mxu0
        %v949 = vpop.f32.mrb[0].mxu0
        %v950 = vadd.f32 %v806, %v949
        %v951 = vpop.f32.mrb[0].mxu0
        %952 = vdwg.mxu0
        %v953 = vmax.f32 %v891, 0.0
        %v954 = vmax.f32 %v894, 0.0
        %v955 = vmax.f32 %v899, 0.0
        %v956 = vmax.f32 %v902, 0.0
        %v957 = vmax.f32 %v907, 0.0
        %v958 = vmax.f32 %v910, 0.0
        %v959 = vmax.f32 %v915, 0.0
        %v960 = vmax.f32 %v918, 0.0
        %v961 = vmax.f32 %v923, 0.0
        %v962 = vmax.f32 %v926, 0.0
        %v963 = vmax.f32 %v931, 0.0
        %v964 = vmax.f32 %v934, 0.0
        %v965 = vmax.f32 %v939, 0.0
        %v966 = vmax.f32 %v942, 0.0
        %v967 = vmax.f32 %v947, 0.0
        %v968 = vmax.f32 %v950, 0.0
        %v969 = vld [vmem:[%s5] sm:$0x1]
        %v970 = vpack.c.bf16 %v954, %v953
        %v971 = vpack.c.bf16 %v956, %v955
        %v972 = vpack.c.bf16 %v958, %v957
        %v973 = vpack.c.bf16 %v960, %v959
        %v974 = vpack.c.bf16 %v962, %v961
        %v975 = vpack.c.bf16 %v964, %v963
        %v976 = vpack.c.bf16 %v966, %v965
        %v977 = vpack.c.bf16 %v968, %v967
        %v978 = vld [vmem:[%s6] sm:$0x3]
        %980 = vset.pattern.permute.xlu0 0
        %981 = vperm.xlu0 %980, %v978
        %v982 = vpop.permute.xlu0 %981
        %984 = vmatprep.subr.bf16.mxu0 0
        %985 = vmatpush1.bf16.msra.mxu0 %v970
        %986 = vmatprep.subr.bf16.mxu0 0
        %987 = vmatpush1.bf16.msra.mxu0 %v971
        %988 = vmatprep.subr.bf16.mxu0 0
        %989 = vmatpush1.bf16.msra.mxu0 %v972
        %990 = vmatprep.subr.bf16.mxu0 0
        %991 = vmatpush1.bf16.msra.mxu0 %v973
        %992 = vmatprep.subr.bf16.mxu0 0
        %993 = vmatpush1.bf16.msra.mxu0 %v974
        %994 = vmatprep.subr.bf16.mxu0 0
        %995 = vmatpush1.bf16.msra.mxu0 %v975
        %996 = vmatprep.subr.bf16.mxu0 0
        %997 = vmatpush1.bf16.msra.mxu0 %v976
        %998 = vmatprep.subr.bf16.mxu0 0
        %999 = vmatpush1.bf16.msra.mxu0 %v977
        %1000 = vmatprep.subr.bf16.mxu0 0
        %1001 = vmatpush1.bf16.msra.mxu0 0
        %1002 = vmatprep.subr.bf16.mxu0 0
        %1003 = vmatpush1.bf16.msra.mxu0 0
        %1004 = vmatprep.subr.bf16.mxu0 0
        %1005 = vmatpush1.bf16.msra.mxu0 0
        %1006 = vmatprep.subr.bf16.mxu0 0
        %1007 = vmatpush1.bf16.msra.mxu0 0
        %1008 = vmatprep.subr.bf16.mxu0 0
        %1009 = vmatpush1.bf16.msra.mxu0 0
        %1010 = vmatprep.subr.bf16.mxu0 0
        %1011 = vmatpush1.bf16.msra.mxu0 0
        %1012 = vmatprep.subr.bf16.mxu0 0
        %1013 = vmatpush1.bf16.msra.mxu0 0
        %1014 = vmatprep.subr.bf16.mxu0 0
        %1015 = vmatpush1.bf16.msra.mxu0 0
        %1016 = vmatprep.mubr.bf16.mxu0 0
        %1017 = vmatmul.mubr.bf16.gmra.mrb[0].mxu0 %v969
        %v1018 = vpop.f32.mrb[0].mxu0
        %v1019 = vadd.f32 %v982, %v1018
        %v1020 = vpop.f32.mrb[0].mxu0
        %v1021 = vpop.f32.mrb[0].mxu0
        %v1022 = vpop.f32.mrb[0].mxu0
        %1023 = vdwg.mxu0
        %v1024 = vlaneseq
        %v1025 = vshrl.u32 %v1024, 7
        %v1026 = vmax.f32 %v1019, 0.0
        %v1027 = vand.u32 2147483647, %v1019
        %v1028 = vsub.f32 0.0, %v1027
        %v1029 = vmul.f32 %v1028, 1.442695
        %v1030 = vpow.pop %v1029
        %v1031 = vadd.f32 %v1030, 1.0
        %v1032 = vlog2.pop %v1031
        %v1033 = vmul.f32 %v1032, 0.6931472
        %v1034 = vmul.f32 -0.5, %v1030
        %v1035 = vadd.f32 %v1034, 1.0
        %v1036 = vmul.f32 %v1035, %v1030
        %v1037 = vand.u32 2147483647, %v1030
        %vm1038 = vcmp.lt.f32.partialorder %v1037, 0.0004427343
        %v1039 = vsel %vm1038, %v1036, %v1033
        %v1040 = vadd.f32 %v1026, %v1039
        %vm1041 = vcmp.lt.s32.totalorder %v1025, 1
        %v1042 = vmul.f32 %v1040, 0.99
        %v1043 = vadd.f32 %v1042, 0.01
        %v1044 = vsel %vm1041, %v1019, %v1043
        %vm1045 = vcmask 123904
        %1046 = vst.msk [vmem:[%s325] sm:$0x3] %vm1045, %v1044
        %s1047 = sand.u32 %s213, 1
        %s1048 = scalar_lea.sflag [#allocation3], %s1047
        %s1049 = sand.u32 %s213, 1
        %s1050 = smul.addr %s1049, 2
        %s1051 = scalar_lea.vmem [#allocation2], %s1050
        // Predicated region
        $region49: #{tpu_custom_call.1} parent=47 // pred_check
          %p1052 = pneg %p223
        $region50: #{tpu_custom_call.1} parent=47 // pred_check_branch
          %1054 = sbr.rel (%p1052) target = $region52
        $region51: #{tpu_custom_call.1} parent=47 // pred_region
          %s1056 = ssub.s32 32, 32
          %1057 = vsyncadd %s1048, %s1056
          %s1058 = sadd.s32 %s28, %s27
          %s1059 = smul.addr %s26, 2
          %s1060 = sadd.s32 %s1058, %s1059
          %s1061 = smul.addr %s1060, 32
          %s1062 = scalar_lea.hbm %s7, %s1061
          %s1064 = sshll.u32 %s1051, 4
          %s1065 = int_to_ptr.vmem [resolvable:$true] %s1064
          %1067 = dma.vmem_to_hbm [thread:$0]  %s1065, 32, %s1062, %s1048
        $region52: #{tpu_custom_call.1} parent=47 // pred_fallthru
          _
      $region48: #{tpu_custom_call.1} parent=5 // pred_fallthru
        _
      %p1068 = scmp.le.s32.totalorder 2, %s16
      // Predicated region
      $region53: #{tpu_custom_call.1} parent=5 // pred_check
        %p1069 = pneg %p1068
      $region54: #{tpu_custom_call.1} parent=5 // pred_check_branch
        %1071 = sbr.rel (%p1069) target = $region56
      $region55: #{tpu_custom_call.1} parent=5 // pred_region
        %s1072 = ssub.s32 %s16, 2
        // Predicated region
        $region57: #{tpu_custom_call.1} parent=55 // pred_check
          %p1073 = pneg %p229
        $region58: #{tpu_custom_call.1} parent=55 // pred_check_branch
          %1075 = sbr.rel (%p1073) target = $region60
        $region59: #{tpu_custom_call.1} parent=55 // pred_region
          %s1076 = sand.u32 %s214, 1
          %s1077 = scalar_lea.sflag [#allocation3], %s1076
          %s1078 = sand.u32 %s214, 1
          %s1079 = smul.addr %s1078, 2
          %s1080 = scalar_lea.vmem [#allocation2], %s1079
          %1081 = dma.done %s1077, 32
        $region60: #{tpu_custom_call.1} parent=55 // pred_fallthru
          _
      $region56: #{tpu_custom_call.1} parent=5 // pred_fallthru
        _
    $region6: #{tpu_custom_call.1} parent=1 // loop_footer
      %s20 = sadd.s32 1, %s16
    $region7: #{tpu_custom_call.1} parent=1 // loop_footer_branch
      %15 = sbr.rel target = $region3
    $region8: #{tpu_custom_call.1} parent=1 // loop_exit
      _
    %1082 = vsyncpa [#allocation3], 1
    %s1083 = scalar_lea.sflag [#allocation3], 1
    %1084 = vsyncpa %s1083, 1

</llo_original>
